<compile_context>
chip_gen: v7x
topology: tpu7x:2x2x1
jax: 0.10.0
libtpu: 0.0.40
codegen_flags: <defaults>
</compile_context>

<pallas_src>
import functools

import jax
import jax.numpy as jnp
from jax import lax
from jax.experimental import pallas as pl
from jax.experimental.pallas import tpu as pltpu


def _choose_tq(N):
    """Query-tile size: whole N for small maps, else a 128-multiple divisor."""
    if N <= 256:
        return N
    for t in (256, 128):
        if N % t == 0:
            return t
    return N  # fallback: non-128-divisible N -> single whole-N tile


def _self_attn_kernel(x_ref, wq_ref, bq_ref, wkv_ref, bkv_ref, g_ref,
                      out_ref, attn_ref=None, *, C8p, tq, compute_dtype):
    """One (batch, query-tile) grid step.

    x_ref:    (1, C, N)  input feature map (channels on sublanes, spatial on lanes)
    wq_ref:   (C8p, C)   zero-padded query projection
    bq_ref:   (C8p, 1)
    wkv_ref:  (C8p+C, C) fused [key | value] projection
    bkv_ref:  (C8p+C, 1)
    g_ref:    (1,)       gamma, in SMEM
    out_ref:  (1, C, tq)
    attn_ref: (1, tq, N) optional attention output
    """
    C = x_ref.shape[1]
    N = x_ref.shape[2]
    cd = compute_dtype

    x_full = x_ref[0]                                    # [C, N] f32

    # Query-tile columns of x (used for the Q projection and the residual).
    if tq == N:
        x_tile = x_full                                  # single tile
    else:
        j = pl.program_id(1)
        start = pl.multiple_of(j * tq, 128)              # tq is a 128-multiple here
        x_tile = x_ref[0, :, pl.ds(start, tq)]           # [C, tq]

    # Fused K|V projection over all positions (1x1 convs == channel matmuls).
    kv = jnp.dot(wkv_ref[...].astype(cd), x_full.astype(cd),
                 preferred_element_type=jnp.float32) + bkv_ref[...]   # [C8p+C, N]
    kT = kv[:C8p, :]                                     # [C8p, N] (zero rows padded)
    vT = kv[C8p:, :]                                     # [C,   N]

    # Q projection for this query tile only.
    qT = jnp.dot(wq_ref[...].astype(cd), x_tile.astype(cd),
                 preferred_element_type=jnp.float32) + bq_ref[...]    # [C8p, tq]

    # energy[n, m] = sum_c q[c, n] * k[c, m]  (zero-padded channel rows add 0)
    energy = lax.dot_general(qT.astype(cd), kT.astype(cd),
                             (((0,), (0,)), ((), ())),
                             preferred_element_type=jnp.float32)      # [tq, N]

    # softmax over keys (last axis); reciprocal-multiply uses the EUP slot.
    energy = energy - jnp.max(energy, axis=-1, keepdims=True)
    e = jnp.exp(energy)
    attn = e * pl.reciprocal(jnp.sum(e, axis=-1, keepdims=True), approx=False)

    # out[c, n] = sum_m v[c, m] * attn[n, m]
    out_t = lax.dot_general(vT.astype(cd), attn.astype(cd),
                            (((1,), (1,)), ((), ())),
                            preferred_element_type=jnp.float32)       # [C, tq]

    out_ref[0] = (g_ref[0] * out_t + x_tile).astype(out_ref.dtype)
    if attn_ref is not None:
        attn_ref[0] = attn.astype(attn_ref.dtype)


def self_attn_pallas(x_nchw, wq, bq, wk, bk, wv, bv, gamma, *,
                     return_attn=True, attn_dtype=jnp.float32,
                     compute_dtype=jnp.float32):
    """Self_Attn forward.

    x_nchw: [B, C, H, W].  wq/wk: [C//8, C], wv: [C, C] (1x1-conv weights), biases 1-D.
    Returns (out [B, C, H, W], attention [B, N, N] or None).
    """
    B, C, H, W = x_nchw.shape
    N = H * W
    C8 = wq.shape[0]
    C8p = ((C8 + 7) // 8) * 8          # pad q/k channel dim to a sublane multiple
    tq = _choose_tq(N)
    n_q = N // tq

    f32 = jnp.float32
    # NCHW -> [B, C, N]: pure reshape (no transpose); spatial axis is lane-dense.
    x_bcn = x_nchw.reshape(B, C, N).astype(f32)

    # Zero-pad q/k projections to C8p rows (zero rows contribute 0 to q.k).
    wq_p = jnp.zeros((C8p, C), f32).at[:C8, :].set(wq.astype(f32))
    bq_p = jnp.zeros((C8p, 1), f32).at[:C8, 0].set(bq.astype(f32))
    wk_p = jnp.zeros((C8p, C), f32).at[:C8, :].set(wk.astype(f32))
    bk_p = jnp.zeros((C8p, 1), f32).at[:C8, 0].set(bk.astype(f32))
    # Fuse K and V projections into one MXU matmul.
    wkv = jnp.concatenate([wk_p, wv.astype(f32)], axis=0)                # [C8p+C, C]
    bkv = jnp.concatenate([bk_p, bv.astype(f32).reshape(C, 1)], axis=0)  # [C8p+C, 1]
    g = jnp.asarray(gamma, f32).reshape(1)

    kernel = functools.partial(_self_attn_kernel, C8p=C8p, tq=tq,
                               compute_dtype=compute_dtype)

    out_shape = [jax.ShapeDtypeStruct((B, C, N), x_nchw.dtype)]
    out_specs = [pl.BlockSpec((1, C, tq), lambda b, j: (b, 0, j))]
    if return_attn:
        out_shape.append(jax.ShapeDtypeStruct((B, N, N), attn_dtype))
        out_specs.append(pl.BlockSpec((1, tq, N), lambda b, j: (b, j, 0)))

    res = pl.pallas_call(
        kernel,
        out_shape=tuple(out_shape),
        grid_spec=pltpu.PrefetchScalarGridSpec(
            num_scalar_prefetch=0,
            grid=(B, n_q),
            in_specs=[
                pl.BlockSpec((1, C, N), lambda b, j: (b, 0, 0)),        # x (per batch)
                pl.BlockSpec((C8p, C), lambda b, j: (0, 0)),            # Wq (padded)
                pl.BlockSpec((C8p, 1), lambda b, j: (0, 0)),            # bq
                pl.BlockSpec((C8p + C, C), lambda b, j: (0, 0)),        # Wk|Wv fused
                pl.BlockSpec((C8p + C, 1), lambda b, j: (0, 0)),        # bk|bv
                pl.BlockSpec(memory_space=pltpu.MemorySpace.SMEM),      # gamma scalar
            ],
            out_specs=tuple(out_specs),
        ),
        compiler_params=pltpu.CompilerParams(
            dimension_semantics=("parallel", "parallel"),
            vmem_limit_bytes=64 * 1024 * 1024,   # fits v7x physical VMEM; > default scoped limit
        ),
    )(x_bcn, wq_p, bq_p, wkv, bkv, g)

    if return_attn:
        out_bcn, attn = res
    else:
        out_bcn = res[0] if isinstance(res, (tuple, list)) else res
        attn = None

    out = out_bcn.reshape(B, C, H, W)
    return out, attn


def _reference(x_nchw, wq, bq, wk, bk, wv, bv, gamma):
    """Pure-JAX reference mirroring the PyTorch forward."""
    B, C, H, W = x_nchw.shape
    N = H * W
    xf = x_nchw.reshape(B, C, N)                               # [B, C, N]
    q = jnp.einsum('oc,bcn->bon', wq, xf) + bq[None, :, None]  # [B, C8, N]
    k = jnp.einsum('oc,bcn->bon', wk, xf) + bk[None, :, None]
    v = jnp.einsum('oc,bcn->bon', wv, xf) + bv[None, :, None]  # [B, C, N]
    energy = jnp.einsum('bcn,bcm->bnm', q, k)                  # [B, N, N]
    attn = jax.nn.softmax(energy, axis=-1)
    out = jnp.einsum('bcm,bnm->bcn', v, attn)                  # [B, C, N]
    out = gamma * out.reshape(B, C, H, W) + x_nchw
    return out, attn


if __name__ == "__main__":
    B, C, H, W = 2, 32, 8, 8          # in_dim=32 -> query/key out channels = 4
    C8 = C // 8

    key = jax.random.PRNGKey(0)
    ks = jax.random.split(key, 8)
    x = jax.random.normal(ks[0], (B, C, H, W), jnp.float32)
    wq = jax.random.normal(ks[1], (C8, C), jnp.float32) * 0.1
    bq = jax.random.normal(ks[2], (C8,), jnp.float32) * 0.1
    wk = jax.random.normal(ks[3], (C8, C), jnp.float32) * 0.1
    bk = jax.random.normal(ks[4], (C8,), jnp.float32) * 0.1
    wv = jax.random.normal(ks[5], (C, C), jnp.float32) * 0.1
    bv = jax.random.normal(ks[6], (C,), jnp.float32) * 0.1
    # module __init__ sets gamma = 0 (identity residual); use a nonzero value so
    # the attention path actually contributes.
    gamma = jnp.float32(0.5)

    ref_out, ref_attn = _reference(x, wq, bq, wk, bk, wv, bv, gamma)

    # 1) exact-semantics mode (f32 compute, attention returned) -- matches the module.
    out, attn = self_attn_pallas(x, wq, bq, wk, bk, wv, bv, gamma)
    jax.block_until_ready(out)
    jax.block_until_ready(attn)
    assert jnp.allclose(out, ref_out, atol=1e-4, rtol=1e-4)
    assert jnp.allclose(attn, ref_attn, atol=1e-5, rtol=1e-4)

    # 2) fast mode: skip the N^2 attention writeback, bf16 MXU operands.
    out_fast, attn_fast = self_attn_pallas(x, wq, bq, wk, bk, wv, bv, gamma,
                                           return_attn=False,
                                           compute_dtype=jnp.bfloat16)
    jax.block_until_ready(out_fast)
    assert attn_fast is None
    assert jnp.allclose(out_fast, ref_out, atol=5e-2, rtol=5e-2)

    print("KERNEL_OK")
</pallas_src>

<mosaic_0001>
module attributes {stable_mosaic.version = 11 : i64} {
  func.func @_self_attn_kernel(%arg0: i32, %arg1: i32, %arg2: memref<1x32x64xf32, #tpu.memory_space<vmem>>, %arg3: memref<8x32xf32, #tpu.memory_space<vmem>>, %arg4: memref<8x1xf32, #tpu.memory_space<vmem>>, %arg5: memref<40x32xf32, #tpu.memory_space<vmem>>, %arg6: memref<40x1xf32, #tpu.memory_space<vmem>>, %arg7: memref<1xf32, #tpu.memory_space<smem>>, %arg8: memref<1x32x64xf32, #tpu.memory_space<vmem>>, %arg9: memref<1x64x64xf32, #tpu.memory_space<vmem>>) attributes {dimension_semantics = [#tpu.dimension_semantics<parallel>, #tpu.dimension_semantics<parallel>], iteration_bounds = array<i64: 2, 1>, scalar_prefetch = 0 : i64, scratch_operands = 0 : i64, tpu.core_type = #tpu.core_type<tc>, window_params = [{transform_indices = @transform_0, window_bounds = array<i64: 1, 32, 64>}, {pipeline_mode = #tpu.pipeline_mode<synchronous>, transform_indices = @transform_1, window_bounds = array<i64: 8, 32>}, {pipeline_mode = #tpu.pipeline_mode<synchronous>, transform_indices = @transform_2, window_bounds = array<i64: 8, 1>}, {pipeline_mode = #tpu.pipeline_mode<synchronous>, transform_indices = @transform_3, window_bounds = array<i64: 40, 32>}, {pipeline_mode = #tpu.pipeline_mode<synchronous>, transform_indices = @transform_4, window_bounds = array<i64: 40, 1>}, {transform_indices = @transform_5, window_bounds = array<i64: 1>}, {transform_indices = @transform_6, window_bounds = array<i64: 1, 32, 64>}, {transform_indices = @transform_7, window_bounds = array<i64: 1, 64, 64>}]} {
    %c0 = arith.constant 0 : index
    %c0_0 = arith.constant 0 : index
    %c0_1 = arith.constant 0 : index
    %0 = vector.load %arg2[%c0, %c0_0, %c0_1] : memref<1x32x64xf32, #tpu.memory_space<vmem>>, vector<1x32x64xf32>
    %1 = vector.shape_cast %0 : vector<1x32x64xf32> to vector<32x64xf32>
    %c0_2 = arith.constant 0 : index
    %c0_3 = arith.constant 0 : index
    %2 = vector.load %arg5[%c0_2, %c0_3] : memref<40x32xf32, #tpu.memory_space<vmem>>, vector<40x32xf32>
    %cst = arith.constant dense<0.000000e+00> : vector<40x64xf32>
    %3 = tpu.matmul %2, %1, %cst {dimension_numbers = #tpu.dot_dimension_numbers<[1], [0], [0], [1], [0, 0, 1, 1], [], []>} : vector<40x32xf32>, vector<32x64xf32>, vector<40x64xf32> -> vector<40x64xf32>
    %c0_4 = arith.constant 0 : index
    %c0_5 = arith.constant 0 : index
    %4 = vector.load %arg6[%c0_4, %c0_5] : memref<40x1xf32, #tpu.memory_space<vmem>>, vector<40x1xf32>
    %5 = vector.broadcast %4 : vector<40x1xf32> to vector<40x64xf32>
    %6 = arith.addf %3, %5 : vector<40x64xf32>
    %7 = vector.extract_strided_slice %6 {offsets = [0, 0], sizes = [8, 64], strides = [1, 1]} : vector<40x64xf32> to vector<8x64xf32>
    %8 = vector.extract_strided_slice %6 {offsets = [8, 0], sizes = [32, 64], strides = [1, 1]} : vector<40x64xf32> to vector<32x64xf32>
    %c0_6 = arith.constant 0 : index
    %c0_7 = arith.constant 0 : index
    %9 = vector.load %arg3[%c0_6, %c0_7] : memref<8x32xf32, #tpu.memory_space<vmem>>, vector<8x32xf32>
    %cst_8 = arith.constant dense<0.000000e+00> : vector<8x64xf32>
    %10 = tpu.matmul %9, %1, %cst_8 {dimension_numbers = #tpu.dot_dimension_numbers<[1], [0], [0], [1], [0, 0, 1, 1], [], []>} : vector<8x32xf32>, vector<32x64xf32>, vector<8x64xf32> -> vector<8x64xf32>
    %c0_9 = arith.constant 0 : index
    %c0_10 = arith.constant 0 : index
    %11 = vector.load %arg4[%c0_9, %c0_10] : memref<8x1xf32, #tpu.memory_space<vmem>>, vector<8x1xf32>
    %12 = vector.broadcast %11 : vector<8x1xf32> to vector<8x64xf32>
    %13 = arith.addf %10, %12 : vector<8x64xf32>
    %cst_11 = arith.constant dense<0.000000e+00> : vector<64x64xf32>
    %14 = tpu.matmul %13, %7, %cst_11 {dimension_numbers = #tpu.dot_dimension_numbers<[0], [0], [1], [1], [0, 1, 1, 1], [], []>} : vector<8x64xf32>, vector<8x64xf32>, vector<64x64xf32> -> vector<64x64xf32>
    %cst_12 = arith.constant dense<0xFF800000> : vector<64xf32>
    %15 = vector.multi_reduction <maximumf>, %14, %cst_12 [1] : vector<64x64xf32> to vector<64xf32>
    %16 = vector.shape_cast %15 : vector<64xf32> to vector<64x1xf32>
    %17 = vector.broadcast %16 : vector<64x1xf32> to vector<64x64xf32>
    %18 = arith.subf %14, %17 : vector<64x64xf32>
    %19 = math.exp %18 : vector<64x64xf32>
    %cst_13 = arith.constant dense<0.000000e+00> : vector<64xf32>
    %20 = vector.multi_reduction <add>, %19, %cst_13 [1] : vector<64x64xf32> to vector<64xf32>
    %21 = vector.shape_cast %20 : vector<64xf32> to vector<64x1xf32>
    %22 = tpu.reciprocal %21 : vector<64x1xf32> -> vector<64x1xf32>
    %23 = vector.broadcast %22 : vector<64x1xf32> to vector<64x64xf32>
    %24 = arith.mulf %19, %23 : vector<64x64xf32>
    %cst_14 = arith.constant dense<0.000000e+00> : vector<32x64xf32>
    %25 = tpu.matmul %8, %24, %cst_14 {dimension_numbers = #tpu.dot_dimension_numbers<[1], [1], [0], [0], [0, 0, 1, 0], [], []>} : vector<32x64xf32>, vector<64x64xf32>, vector<32x64xf32> -> vector<32x64xf32>
    %c0_15 = arith.constant 0 : index
    %26 = memref.load %arg7[%c0_15] : memref<1xf32, #tpu.memory_space<smem>>
    %27 = vector.broadcast %26 : f32 to vector<32x64xf32>
    %28 = arith.mulf %27, %25 : vector<32x64xf32>
    %29 = arith.addf %28, %1 : vector<32x64xf32>
    %c0_16 = arith.constant 0 : index
    %c0_17 = arith.constant 0 : index
    %c0_18 = arith.constant 0 : index
    %30 = vector.load %arg8[%c0_16, %c0_17, %c0_18] : memref<1x32x64xf32, #tpu.memory_space<vmem>>, vector<1x32x64xf32>
    %31 = vector.shape_cast %30 : vector<1x32x64xf32> to vector<32x64xf32>
    %32 = vector.shape_cast %29 : vector<32x64xf32> to vector<1x32x64xf32>
    tpu.vector_store %arg8[%c0_16, %c0_17, %c0_18], %32 {strides = array<i32>} : memref<1x32x64xf32, #tpu.memory_space<vmem>>, vector<1x32x64xf32>,
    %c0_19 = arith.constant 0 : index
    %c0_20 = arith.constant 0 : index
    %c0_21 = arith.constant 0 : index
    %33 = vector.load %arg9[%c0_19, %c0_20, %c0_21] : memref<1x64x64xf32, #tpu.memory_space<vmem>>, vector<1x64x64xf32>
    %34 = vector.shape_cast %33 : vector<1x64x64xf32> to vector<64x64xf32>
    %35 = vector.shape_cast %24 : vector<64x64xf32> to vector<1x64x64xf32>
    tpu.vector_store %arg9[%c0_19, %c0_20, %c0_21], %35 {strides = array<i32>} : memref<1x64x64xf32, #tpu.memory_space<vmem>>, vector<1x64x64xf32>,
    return
  }
  func.func @transform_0(%arg0: i32, %arg1: i32) -> (i32, i32, i32) {
    %c0_i32 = arith.constant 0 : i32
    %c0_i32_0 = arith.constant 0 : i32
    %c0_i32_1 = arith.constant 0 : i32
    return %arg0, %c0_i32, %c0_i32_0 : i32, i32, i32
  }
  func.func @transform_1(%arg0: i32, %arg1: i32) -> (i32, i32) {
    %c0_i32 = arith.constant 0 : i32
    %c0_i32_0 = arith.constant 0 : i32
    %c0_i32_1 = arith.constant 0 : i32
    return %c0_i32, %c0_i32_0 : i32, i32
  }
  func.func @transform_2(%arg0: i32, %arg1: i32) -> (i32, i32) {
    %c0_i32 = arith.constant 0 : i32
    %c0_i32_0 = arith.constant 0 : i32
    %c0_i32_1 = arith.constant 0 : i32
    return %c0_i32, %c0_i32_0 : i32, i32
  }
  func.func @transform_3(%arg0: i32, %arg1: i32) -> (i32, i32) {
    %c0_i32 = arith.constant 0 : i32
    %c0_i32_0 = arith.constant 0 : i32
    %c0_i32_1 = arith.constant 0 : i32
    return %c0_i32, %c0_i32_0 : i32, i32
  }
  func.func @transform_4(%arg0: i32, %arg1: i32) -> (i32, i32) {
    %c0_i32 = arith.constant 0 : i32
    %c0_i32_0 = arith.constant 0 : i32
    %c0_i32_1 = arith.constant 0 : i32
    return %c0_i32, %c0_i32_0 : i32, i32
  }
  func.func @transform_5(%arg0: i32, %arg1: i32) -> i32 {
    %c0_i32 = arith.constant 0 : i32
    %c0_i32_0 = arith.constant 0 : i32
    return %c0_i32 : i32
  }
  func.func @transform_6(%arg0: i32, %arg1: i32) -> (i32, i32, i32) {
    %c0_i32 = arith.constant 0 : i32
    %c0_i32_0 = arith.constant 0 : i32
    return %arg0, %c0_i32, %arg1 : i32, i32, i32
  }
  func.func @transform_7(%arg0: i32, %arg1: i32) -> (i32, i32, i32) {
    %c0_i32 = arith.constant 0 : i32
    %c0_i32_0 = arith.constant 0 : i32
    return %arg0, %arg1, %c0_i32 : i32, i32, i32
  }
}

</mosaic_0001>

<llo_original>
// kernel: tpu_custom_call.1
$region0: #{tpu_custom_call.1}
  #allocation0 [shape = 'u32[]', space=smem, size = 0x4, offset = 0x4, fixed_abs, tag = 'smem constant byte address 0x4 - core index']
  #allocation1 [shape = 'u32[144,128]{1,0:T(1,128)}', space=vmem, size = 0x12000, scoped, tag = 'internal scratch']
  #allocation2 [shape = 'f32[1]{0:T(128)S(6)}', space=smem, size = 0x200, scoped, tag = 'scoped memory for tpu_custom_call.1']
  %s0 = inlined_call_operand.hbm [shape: f32[2,32,64], index: 0, kind: input, shape index: {}]
  %s1 = inlined_call_operand.hbm [shape: f32[8,32], index: 1, kind: input, shape index: {}]
  %s2 = inlined_call_operand.hbm [shape: f32[8,1], index: 2, kind: input, shape index: {}]
  %s3 = inlined_call_operand.hbm [shape: f32[40,32], index: 3, kind: input, shape index: {}]
  %s4 = inlined_call_operand.hbm [shape: f32[40,1], index: 4, kind: input, shape index: {}]
  %s5 = inlined_call_operand.<no memory space> [shape: f32[1], index: 5, kind: input, shape index: {}]
  %s6 = inlined_call_operand.hbm [shape: f32[2,32,64], index: 6, kind: output, shape index: {0}]
  %s7 = inlined_call_operand.hbm [shape: f32[2,64,64], index: 7, kind: output, shape index: {1}]
  %8 = xla_tuple %s6, %s7
  %s9 = sld [smem:[#allocation0]]
  $region85: #{tpu_custom_call.1} parent=0
    _
  %s11 = ssub.s32 1, %s9
  %s12 = scalar_select 0, %s11, %s9
  %13 = sst [smem:[#allocation2]] %s5
  $region1: #{tpu_custom_call.1} parent=0
    #allocation3 [shape = 'u8[32768]{0}', space=vmem, size = 0x8000, scoped, tag = 'input window, operand 0']
    #allocation4 [shape = 's32[2]{0}', space=sflag, size = 0x8, scoped, tag = 'scoped memory for tpu_custom_call.1']
    #allocation5 [shape = 's32[2]{0}', space=sflag, size = 0x8, scoped, tag = 'scoped memory for tpu_custom_call.1']
    #allocation6 [shape = 'u8[4096]{0}', space=vmem, size = 0x1000, scoped, tag = 'input window, operand 1, single buffered']
    #allocation7 [shape = 's32[1]{0}', space=sflag, size = 0x4, scoped, tag = 'scoped memory for tpu_custom_call.1']
    #allocation8 [shape = 'u8[4096]{0}', space=vmem, size = 0x1000, scoped, tag = 'input window, operand 2, single buffered']
    #allocation9 [shape = 'u8[20480]{0}', space=vmem, size = 0x5000, scoped, tag = 'input window, operand 3, single buffered']
    #allocation10 [shape = 's32[1]{0}', space=sflag, size = 0x4, scoped, tag = 'scoped memory for tpu_custom_call.1']
    #allocation11 [shape = 'u8[20480]{0}', space=vmem, size = 0x5000, scoped, tag = 'input window, operand 4, single buffered']
    #allocation12 [shape = 'u8[32768]{0}', space=vmem, size = 0x8000, scoped, tag = 'output window, operand 0']
    #allocation13 [shape = 'u8[65536]{0}', space=vmem, size = 0x10000, scoped, tag = 'output window, operand 1']
    #allocation14 [shape = 's32[2]{0}', space=sflag, size = 0x8, scoped, tag = 'scoped memory for tpu_custom_call.1']
    %14 = vsyncpa [#allocation4], 0
    %s15 = scalar_lea.sflag [#allocation4], 1
    %16 = vsyncpa %s15, 0
    %17 = vsyncpa [#allocation7], 0
    %18 = vsyncpa [#allocation10], 0
    %19 = vsyncpa [#allocation5], 0
    %s20 = scalar_lea.sflag [#allocation5], 1
    %21 = vsyncpa %s20, 0
    %22 = vsyncpa [#allocation14], 0
    %s23 = scalar_lea.sflag [#allocation14], 1
    %24 = vsyncpa %s23, 0
    loop: start=0, step=1, limit=4
    $region2: #{tpu_custom_call.1} parent=1 // loop_pre_header
      _
    $region3: #{tpu_custom_call.1} parent=1 // loop_header
      %s26 = sphi 0, %s30
      %p27 = scmp.ge.s32.totalorder %s26, 4
      %s33 = sphi 0, %s45
      %s34 = sphi 0, %s41
      %s35 = sphi 0, %s33
      %s36 = sphi 0, %s34
      %s37 = sphi 0, %s35
      %s38 = sphi 0, %s36
      %s48 = sphi 0, %s50
      %s51 = sphi 0, %s48
      %s52 = sphi 0, %s51
      %s68 = sphi 0, %s52
      %s72 = sphi 0, %s72
      %s74 = sphi 0, %s72
      %s75 = sphi 0, %s74
      %s89 = sphi 0, %s75
      %s93 = sphi 0, %s93
      %s95 = sphi 0, %s93
      %s96 = sphi 0, %s95
      %s110 = sphi 0, %s96
      %s114 = sphi 0, %s114
      %s116 = sphi 0, %s114
      %s117 = sphi 0, %s116
      %s131 = sphi 0, %s117
      %s135 = sphi 0, %s135
      %s137 = sphi 0, %s135
      %s138 = sphi 0, %s137
      %s152 = sphi 0, %s138
      %s156 = sphi 0, %s156
      %s158 = sphi 0, %s156
      %s159 = sphi 0, %s158
      %s173 = sphi 0, %s159
      %s181 = sphi 0, %s183
      %s184 = sphi 0, %s181
      %s185 = sphi 0, %s184
      %s201 = sphi 0, %s185
      %s209 = sphi 0, %s211
      %s212 = sphi 0, %s209
      %s213 = sphi 0, %s212
      %s229 = sphi 0, %s213
    $region4: #{tpu_custom_call.1} parent=1 // loop_header_branch
      %29 = sbr.rel (%p27) target = $region8
    $region5: #{tpu_custom_call.1} parent=1 // loop_body
      %s31 = ssub.s32 %s26, 1
      %s32 = ssub.s32 %s26, 2
      %s39 = sadd.s32 1, %s34
      %p40 = scmp.ge.s32.totalorder %s39, 1
      %s41 = scalar_select %p40, 0, %s39
      %s42 = sadd.s32 1, %s33
      %s43 = scalar_select %p40, %s42, %s33
      %p44 = scmp.ge.s32.totalorder %s43, 2
      %s45 = scalar_select %p44, 0, %s43
      %s46 = ssub.s32 %s33, %s45
      %p47 = scmp.eq.s32.totalorder %s46, 0
      %s49 = sadd.s32 %s48, 1
      %s50 = scalar_select %p47, %s48, %s49
      %p53 = pneg %p47
      %p54 = scmp.eq.s32.totalorder %s26, 1
      %p55 = por %p53, %p54
      %p56 = scmp.ne.s32.totalorder %s48, %s51
      %p57 = scmp.eq.s32.totalorder %s26, 0
      %p58 = por %p56, %p57
      %p59 = scmp.ne.s32.totalorder %s48, %s51
      %p60 = scmp.eq.s32.totalorder %s31, 1
      %p61 = por %p59, %p60
      %p62 = scmp.ne.s32.totalorder %s51, %s52
      %p63 = scmp.eq.s32.totalorder %s31, 0
      %p64 = por %p62, %p63
      %p65 = scmp.ne.s32.totalorder %s51, %s52
      %p66 = scmp.eq.s32.totalorder %s32, 1
      %p67 = por %p65, %p66
      %p69 = scmp.ne.s32.totalorder %s52, %s68
      %p70 = scmp.eq.s32.totalorder %s32, 0
      %p71 = por %p69, %p70
      %s73 = sadd.s32 %s72, 1
      %p76 = scmp.eq.s32.totalorder %s26, 1
      %p77 = scmp.ne.s32.totalorder %s72, %s74
      %p78 = scmp.eq.s32.totalorder %s26, 0
      %p79 = por %p77, %p78
      %p80 = scmp.ne.s32.totalorder %s72, %s74
      %p81 = scmp.eq.s32.totalorder %s31, 1
      %p82 = por %p80, %p81
      %p83 = scmp.ne.s32.totalorder %s74, %s75
      %p84 = scmp.eq.s32.totalorder %s31, 0
      %p85 = por %p83, %p84
      %p86 = scmp.ne.s32.totalorder %s74, %s75
      %p87 = scmp.eq.s32.totalorder %s32, 1
      %p88 = por %p86, %p87
      %p90 = scmp.ne.s32.totalorder %s75, %s89
      %p91 = scmp.eq.s32.totalorder %s32, 0
      %p92 = por %p90, %p91
      %s94 = sadd.s32 %s93, 1
      %p97 = scmp.eq.s32.totalorder %s26, 1
      %p98 = scmp.ne.s32.totalorder %s93, %s95
      %p99 = scmp.eq.s32.totalorder %s26, 0
      %p100 = por %p98, %p99
      %p101 = scmp.ne.s32.totalorder %s93, %s95
      %p102 = scmp.eq.s32.totalorder %s31, 1
      %p103 = por %p101, %p102
      %p104 = scmp.ne.s32.totalorder %s95, %s96
      %p105 = scmp.eq.s32.totalorder %s31, 0
      %p106 = por %p104, %p105
      %p107 = scmp.ne.s32.totalorder %s95, %s96
      %p108 = scmp.eq.s32.totalorder %s32, 1
      %p109 = por %p107, %p108
      %p111 = scmp.ne.s32.totalorder %s96, %s110
      %p112 = scmp.eq.s32.totalorder %s32, 0
      %p113 = por %p111, %p112
      %s115 = sadd.s32 %s114, 1
      %p118 = scmp.eq.s32.totalorder %s26, 1
      %p119 = scmp.ne.s32.totalorder %s114, %s116
      %p120 = scmp.eq.s32.totalorder %s26, 0
      %p121 = por %p119, %p120
      %p122 = scmp.ne.s32.totalorder %s114, %s116
      %p123 = scmp.eq.s32.totalorder %s31, 1
      %p124 = por %p122, %p123
      %p125 = scmp.ne.s32.totalorder %s116, %s117
      %p126 = scmp.eq.s32.totalorder %s31, 0
      %p127 = por %p125, %p126
      %p128 = scmp.ne.s32.totalorder %s116, %s117
      %p129 = scmp.eq.s32.totalorder %s32, 1
      %p130 = por %p128, %p129
      %p132 = scmp.ne.s32.totalorder %s117, %s131
      %p133 = scmp.eq.s32.totalorder %s32, 0
      %p134 = por %p132, %p133
      %s136 = sadd.s32 %s135, 1
      %p139 = scmp.eq.s32.totalorder %s26, 1
      %p140 = scmp.ne.s32.totalorder %s135, %s137
      %p141 = scmp.eq.s32.totalorder %s26, 0
      %p142 = por %p140, %p141
      %p143 = scmp.ne.s32.totalorder %s135, %s137
      %p144 = scmp.eq.s32.totalorder %s31, 1
      %p145 = por %p143, %p144
      %p146 = scmp.ne.s32.totalorder %s137, %s138
      %p147 = scmp.eq.s32.totalorder %s31, 0
      %p148 = por %p146, %p147
      %p149 = scmp.ne.s32.totalorder %s137, %s138
      %p150 = scmp.eq.s32.totalorder %s32, 1
      %p151 = por %p149, %p150
      %p153 = scmp.ne.s32.totalorder %s138, %s152
      %p154 = scmp.eq.s32.totalorder %s32, 0
      %p155 = por %p153, %p154
      %s157 = sadd.s32 %s156, 1
      %p160 = scmp.eq.s32.totalorder %s26, 1
      %p161 = scmp.ne.s32.totalorder %s156, %s158
      %p162 = scmp.eq.s32.totalorder %s26, 0
      %p163 = por %p161, %p162
      %p164 = scmp.ne.s32.totalorder %s156, %s158
      %p165 = scmp.eq.s32.totalorder %s31, 1
      %p166 = por %p164, %p165
      %p167 = scmp.ne.s32.totalorder %s158, %s159
      %p168 = scmp.eq.s32.totalorder %s31, 0
      %p169 = por %p167, %p168
      %p170 = scmp.ne.s32.totalorder %s158, %s159
      %p171 = scmp.eq.s32.totalorder %s32, 1
      %p172 = por %p170, %p171
      %p174 = scmp.ne.s32.totalorder %s159, %s173
      %p175 = scmp.eq.s32.totalorder %s32, 0
      %p176 = por %p174, %p175
      %s177 = ssub.s32 %s33, %s45
      %s178 = ssub.s32 %s34, %s41
      %s179 = sor.u32 %s177, %s178
      %p180 = scmp.eq.s32.totalorder %s179, 0
      %s182 = sadd.s32 %s181, 1
      %s183 = scalar_select %p180, %s181, %s182
      %p186 = pneg %p180
      %p187 = scmp.eq.s32.totalorder %s26, 1
      %p188 = por %p186, %p187
      %p189 = scmp.ne.s32.totalorder %s181, %s184
      %p190 = scmp.eq.s32.totalorder %s26, 0
      %p191 = por %p189, %p190
      %p192 = scmp.ne.s32.totalorder %s181, %s184
      %p193 = scmp.eq.s32.totalorder %s31, 1
      %p194 = por %p192, %p193
      %p195 = scmp.ne.s32.totalorder %s184, %s185
      %p196 = scmp.eq.s32.totalorder %s31, 0
      %p197 = por %p195, %p196
      %p198 = scmp.ne.s32.totalorder %s184, %s185
      %p199 = scmp.eq.s32.totalorder %s32, 1
      %p200 = por %p198, %p199
      %p202 = scmp.ne.s32.totalorder %s185, %s201
      %p203 = scmp.eq.s32.totalorder %s32, 0
      %p204 = por %p202, %p203
      %s205 = ssub.s32 %s33, %s45
      %s206 = ssub.s32 %s34, %s41
      %s207 = sor.u32 %s205, %s206
      %p208 = scmp.eq.s32.totalorder %s207, 0
      %s210 = sadd.s32 %s209, 1
      %s211 = scalar_select %p208, %s209, %s210
      %p214 = pneg %p208
      %p215 = scmp.eq.s32.totalorder %s26, 1
      %p216 = por %p214, %p215
      %p217 = scmp.ne.s32.totalorder %s209, %s212
      %p218 = scmp.eq.s32.totalorder %s26, 0
      %p219 = por %p217, %p218
      %p220 = scmp.ne.s32.totalorder %s209, %s212
      %p221 = scmp.eq.s32.totalorder %s31, 1
      %p222 = por %p220, %p221
      %p223 = scmp.ne.s32.totalorder %s212, %s213
      %p224 = scmp.eq.s32.totalorder %s31, 0
      %p225 = por %p223, %p224
      %p226 = scmp.ne.s32.totalorder %s212, %s213
      %p227 = scmp.eq.s32.totalorder %s32, 1
      %p228 = por %p226, %p227
      %p230 = scmp.ne.s32.totalorder %s213, %s229
      %p231 = scmp.eq.s32.totalorder %s32, 0
      %p232 = por %p230, %p231
      %p233 = scmp.le.s32.totalorder 1, %s26
      %p234 = scmp.lt.s32.totalorder %s26, 3
      %p235 = pnand %p233, %p234
      %p236 = pneg %p235
      // Predicated region
      $region9: #{tpu_custom_call.1} parent=5 // pred_check
        _
      $region10: #{tpu_custom_call.1} parent=5 // pred_check_branch
        %238 = sbr.rel (%p235) target = $region12
      $region11: #{tpu_custom_call.1} parent=5 // pred_region
        %s239 = ssub.s32 %s26, 1
        // Predicated region
        $region13: #{tpu_custom_call.1} parent=11 // pred_check
          %p240 = pneg %p85
        $region14: #{tpu_custom_call.1} parent=11 // pred_check_branch
          %242 = sbr.rel (%p240) target = $region16
        $region15: #{tpu_custom_call.1} parent=11 // pred_region
          %s244 = ssub.s32 128, 128
          %245 = vsyncadd [#allocation7], %s244
          %s247 = sshll.u32 [#allocation6], 4
          %s248 = int_to_ptr.vmem [resolvable:$true] %s247
          %250 = dma.hbm_to_vmem [thread:$0]  %s1, 128, %s248, [#allocation7]
        $region16: #{tpu_custom_call.1} parent=11 // pred_fallthru
          _
        // Predicated region
        $region17: #{tpu_custom_call.1} parent=11 // pred_check
          %p251 = pneg %p106
        $region18: #{tpu_custom_call.1} parent=11 // pred_check_branch
          %253 = sbr.rel (%p251) target = $region20
        $region19: #{tpu_custom_call.1} parent=11 // pred_region
          %s255 = ssub.s32 128, 128
          %256 = vsyncadd [#allocation7], %s255
          %s258 = sshll.u32 [#allocation8], 4
          %s259 = int_to_ptr.vmem [resolvable:$true] %s258
          %261 = dma.hbm_to_vmem [thread:$0]  %s2, 128, %s259, [#allocation7]
        $region20: #{tpu_custom_call.1} parent=11 // pred_fallthru
          _
        // Predicated region
        $region21: #{tpu_custom_call.1} parent=11 // pred_check
          %p262 = pneg %p127
        $region22: #{tpu_custom_call.1} parent=11 // pred_check_branch
          %264 = sbr.rel (%p262) target = $region24
        $region23: #{tpu_custom_call.1} parent=11 // pred_region
          %s266 = ssub.s32 640, 640
          %267 = vsyncadd [#allocation10], %s266
          %s268 = sshll.u32 [#allocation9], 4
          %s269 = int_to_ptr.vmem [resolvable:$true] %s268
          %274 = dma.hbm_to_vmem [thread:$0]  %s3, 640, %s269, [#allocation10], 128, 128, 8
        $region24: #{tpu_custom_call.1} parent=11 // pred_fallthru
          _
        // Predicated region
        $region25: #{tpu_custom_call.1} parent=11 // pred_check
          %p275 = pneg %p148
        $region26: #{tpu_custom_call.1} parent=11 // pred_check_branch
          %277 = sbr.rel (%p275) target = $region28
        $region27: #{tpu_custom_call.1} parent=11 // pred_region
          %s279 = ssub.s32 640, 640
          %280 = vsyncadd [#allocation10], %s279
          %s281 = sshll.u32 [#allocation11], 4
          %s282 = int_to_ptr.vmem [resolvable:$true] %s281
          %287 = dma.hbm_to_vmem [thread:$0]  %s4, 640, %s282, [#allocation10], 128, 128, 8
        $region28: #{tpu_custom_call.1} parent=11 // pred_fallthru
          _
        // Predicated region
        $region29: #{tpu_custom_call.1} parent=11 // pred_check
          %p288 = pneg %p169
        $region30: #{tpu_custom_call.1} parent=11 // pred_check_branch
          %290 = sbr.rel (%p288) target = $region32
        $region31: #{tpu_custom_call.1} parent=11 // pred_region
          _
        $region32: #{tpu_custom_call.1} parent=11 // pred_fallthru
          _
      $region12: #{tpu_custom_call.1} parent=5 // pred_fallthru
        _
      %p291 = scmp.lt.s32.totalorder %s26, 2
      // Predicated region
      $region33: #{tpu_custom_call.1} parent=5 // pred_check
        %p292 = pneg %p291
      $region34: #{tpu_custom_call.1} parent=5 // pred_check_branch
        %294 = sbr.rel (%p292) target = $region36
      $region35: #{tpu_custom_call.1} parent=5 // pred_region
        // Predicated region
        $region37: #{tpu_custom_call.1} parent=35 // pred_check
          %p295 = pneg %p58
        $region38: #{tpu_custom_call.1} parent=35 // pred_check_branch
          %297 = sbr.rel (%p295) target = $region40
        $region39: #{tpu_custom_call.1} parent=35 // pred_region
          %s298 = sand.u32 %s48, 1
          %s299 = scalar_lea.sflag [#allocation4], %s298
          %s300 = sand.u32 %s48, 1
          %s301 = smul.addr %s300, 32
          %s302 = scalar_lea.vmem [#allocation3], %s301
          %s304 = ssub.s32 512, 512
          %305 = vsyncadd %s299, %s304
          %s306 = smul.addr %s33, 4
          %s307 = smul.addr %s306, 128
          %s308 = scalar_lea.hbm %s0, %s307
          %s309 = sshll.u32 %s302, 4
          %s310 = int_to_ptr.vmem [resolvable:$true] %s309
          %315 = dma.hbm_to_vmem [thread:$0]  %s308, 512, %s310, %s299, 128, 128, 8
        $region40: #{tpu_custom_call.1} parent=35 // pred_fallthru
          _
      $region36: #{tpu_custom_call.1} parent=5 // pred_fallthru
        _
      %p316 = scmp.le.s32.totalorder 1, %s26
      %p317 = scmp.lt.s32.totalorder %s26, 3
      %p318 = pnand %p316, %p317
      %p319 = pneg %p318
      // Predicated region
      $region41: #{tpu_custom_call.1} parent=5 // pred_check
        _
      $region42: #{tpu_custom_call.1} parent=5 // pred_check_branch
        %321 = sbr.rel (%p318) target = $region44
      $region43: #{tpu_custom_call.1} parent=5 // pred_region
        %s322 = ssub.s32 %s26, 1
        %s323 = sand.u32 %s51, 1
        %s324 = scalar_lea.sflag [#allocation4], %s323
        %s325 = sand.u32 %s51, 1
        %s326 = smul.addr %s325, 32
        %s327 = scalar_lea.vmem [#allocation3], %s326
        // Predicated region
        $region45: #{tpu_custom_call.1} parent=43 // pred_check
          %p328 = pneg %p64
        $region46: #{tpu_custom_call.1} parent=43 // pred_check_branch
          %330 = sbr.rel (%p328) target = $region48
        $region47: #{tpu_custom_call.1} parent=43 // pred_region
          %331 = dma.done %s324, 512
        $region48: #{tpu_custom_call.1} parent=43 // pred_fallthru
          _
        // Predicated region
        $region49: #{tpu_custom_call.1} parent=43 // pred_check
          %p332 = pneg %p85
        $region50: #{tpu_custom_call.1} parent=43 // pred_check_branch
          %334 = sbr.rel (%p332) target = $region52
        $region51: #{tpu_custom_call.1} parent=43 // pred_region
          %335 = dma.done [#allocation7], 128
        $region52: #{tpu_custom_call.1} parent=43 // pred_fallthru
          _
        // Predicated region
        $region53: #{tpu_custom_call.1} parent=43 // pred_check
          %p336 = pneg %p106
        $region54: #{tpu_custom_call.1} parent=43 // pred_check_branch
          %338 = sbr.rel (%p336) target = $region56
        $region55: #{tpu_custom_call.1} parent=43 // pred_region
          %339 = dma.done [#allocation7], 128
        $region56: #{tpu_custom_call.1} parent=43 // pred_fallthru
          _
        // Predicated region
        $region57: #{tpu_custom_call.1} parent=43 // pred_check
          %p340 = pneg %p127
        $region58: #{tpu_custom_call.1} parent=43 // pred_check_branch
          %342 = sbr.rel (%p340) target = $region60
        $region59: #{tpu_custom_call.1} parent=43 // pred_region
          %343 = dma.done [#allocation10], 640
        $region60: #{tpu_custom_call.1} parent=43 // pred_fallthru
          _
        // Predicated region
        $region61: #{tpu_custom_call.1} parent=43 // pred_check
          %p344 = pneg %p148
        $region62: #{tpu_custom_call.1} parent=43 // pred_check_branch
          %346 = sbr.rel (%p344) target = $region64
        $region63: #{tpu_custom_call.1} parent=43 // pred_region
          %347 = dma.done [#allocation10], 640
        $region64: #{tpu_custom_call.1} parent=43 // pred_fallthru
          _
        %s348 = sand.u32 %s51, 1
        %s349 = scalar_lea.sflag [#allocation4], %s348
        %s350 = sand.u32 %s51, 1
        %s351 = smul.addr %s350, 32
        %s352 = scalar_lea.vmem [#allocation3], %s351
        %p353 = pneg %p64
        %p354 = pneg %p61
        %p355 = pneg %p85
        %p356 = pneg %p82
        %p357 = pneg %p106
        %p358 = pneg %p103
        %p359 = pneg %p127
        %p360 = pneg %p124
        %p361 = pneg %p148
        %p362 = pneg %p145
        %p363 = pneg %p169
        %p364 = pneg %p166
        %p365 = pneg %p197
        %p366 = pneg %p194
        %s367 = sand.u32 %s184, 1
        %s368 = scalar_lea.sflag [#allocation5], %s367
        %s369 = sand.u32 %s184, 1
        %s370 = smul.addr %s369, 32
        %s371 = scalar_lea.vmem [#allocation12], %s370
        %p372 = pneg %p225
        %p373 = pneg %p222
        %s374 = sand.u32 %s212, 1
        %s375 = scalar_lea.sflag [#allocation14], %s374
        %s376 = sand.u32 %s212, 1
        %s377 = smul.addr %s376, 64
        %s378 = scalar_lea.vmem [#allocation13], %s377
        %s379 = smul.u32 8, %s36
        %v380 = vld [vmem:[%s327] sm:$0xff]
        %v381 = vld [vmem:[%s327 + $0x8] sm:$0xff]
        %v382 = vld [vmem:[%s327 + $0x10] sm:$0xff]
        %v383 = vld [vmem:[%s327 + $0x18] sm:$0xff]
        %v384 = vld [vmem:[#allocation9] sm:$0xff]
        %v385 = vld [vmem:[#allocation9 + $0x8] sm:$0xff]
        %v386 = vld [vmem:[#allocation9 + $0x10] sm:$0xff]
        %v387 = vld [vmem:[#allocation9 + $0x18] sm:$0xff]
        %v388 = vld [vmem:[#allocation9 + $0x20] sm:$0xff]
        %v389 = vld [vmem:[#allocation11] sm:$0xff]
        %v390 = vld [vmem:[#allocation11 + $0x8] sm:$0xff]
        %v391 = vld [vmem:[#allocation11 + $0x10] sm:$0xff]
        %v392 = vld [vmem:[#allocation11 + $0x18] sm:$0xff]
        %v393 = vld [vmem:[#allocation11 + $0x20] sm:$0xff]
        %395 = vset.pattern.permute.xlu0 0
        %396 = vperm.xlu0 %395, %v389
        %v397 = vpop.permute.xlu0 %396
        %400 = vset.pattern.permute.xlu0 0
        %401 = vperm.xlu0 %400, %v390
        %v402 = vpop.permute.xlu0 %401
        %405 = vset.pattern.permute.xlu0 0
        %406 = vperm.xlu0 %405, %v391
        %v407 = vpop.permute.xlu0 %406
        %410 = vset.pattern.permute.xlu0 0
        %411 = vperm.xlu0 %410, %v392
        %v412 = vpop.permute.xlu0 %411
        %415 = vset.pattern.permute.xlu0 0
        %416 = vperm.xlu0 %415, %v393
        %v417 = vpop.permute.xlu0 %416
        %vm419 = vcmask 261120
        %v421 = vsel %vm419, %v384, 0
        %v424 = vsel %vm419, %v385, 0
        %v427 = vsel %vm419, %v386, 0
        %v430 = vsel %vm419, %v387, 0
        %v433 = vsel %vm419, %v388, 0
        %435 = vmatprep.subr.mxu0 0.0
        %436 = vmatpush1.msra.mxu0 %v380
        %437 = vmatprep.subr.mxu0 0.0
        %438 = vmatpush1.msra.mxu0 %v381
        %439 = vmatprep.subr.mxu0 0.0
        %440 = vmatpush1.msra.mxu0 %v382
        %441 = vmatprep.subr.mxu0 0.0
        %442 = vmatpush1.msra.mxu0 %v383
        %443 = vmatprep.subr.mxu0 0.0
        %444 = vmatpush1.msra.mxu0 0.0
        %445 = vmatprep.subr.mxu0 0.0
        %446 = vmatpush1.msra.mxu0 0.0
        %447 = vmatprep.subr.mxu0 0.0
        %448 = vmatpush1.msra.mxu0 0.0
        %449 = vmatprep.subr.mxu0 0.0
        %450 = vmatpush1.msra.mxu0 0.0
        %451 = vmatprep.subr.mxu0 0.0
        %452 = vmatpush1.msra.mxu0 0.0
        %453 = vmatprep.subr.mxu0 0.0
        %454 = vmatpush1.msra.mxu0 0.0
        %455 = vmatprep.subr.mxu0 0.0
        %456 = vmatpush1.msra.mxu0 0.0
        %457 = vmatprep.subr.mxu0 0.0
        %458 = vmatpush1.msra.mxu0 0.0
        %459 = vmatprep.subr.mxu0 0.0
        %460 = vmatpush1.msra.mxu0 0.0
        %461 = vmatprep.subr.mxu0 0.0
        %462 = vmatpush1.msra.mxu0 0.0
        %463 = vmatprep.subr.mxu0 0.0
        %464 = vmatpush1.msra.mxu0 0.0
        %465 = vmatprep.subr.mxu0 0.0
        %466 = vmatpush1.msra.mxu0 0.0
        %467 = vmatprep.subr.mxu0 0.0
        %468 = vmatpush1.msra.mxu0 0.0
        %469 = vmatprep.subr.mxu0 0.0
        %470 = vmatpush1.msra.mxu0 0.0
        %471 = vmatprep.subr.mxu0 0.0
        %472 = vmatpush1.msra.mxu0 0.0
        %473 = vmatprep.subr.mxu0 0.0
        %474 = vmatpush1.msra.mxu0 0.0
        %475 = vmatprep.subr.mxu0 0.0
        %476 = vmatpush1.msra.mxu0 0.0
        %477 = vmatprep.subr.mxu0 0.0
        %478 = vmatpush1.msra.mxu0 0.0
        %479 = vmatprep.subr.mxu0 0.0
        %480 = vmatpush1.msra.mxu0 0.0
        %481 = vmatprep.subr.mxu0 0.0
        %482 = vmatpush1.msra.mxu0 0.0
        %483 = vmatprep.subr.mxu0 0.0
        %484 = vmatpush1.msra.mxu0 0.0
        %485 = vmatprep.subr.mxu0 0.0
        %486 = vmatpush1.msra.mxu0 0.0
        %487 = vmatprep.subr.mxu0 0.0
        %488 = vmatpush1.msra.mxu0 0.0
        %489 = vmatprep.subr.mxu0 0.0
        %490 = vmatpush1.msra.mxu0 0.0
        %491 = vmatprep.subr.mxu0 0.0
        %492 = vmatpush1.msra.mxu0 0.0
        %493 = vmatprep.subr.mxu0 0.0
        %494 = vmatpush1.msra.mxu0 0.0
        %495 = vmatprep.subr.mxu0 0.0
        %496 = vmatpush1.msra.mxu0 0.0
        %497 = vmatprep.subr.mxu0 0.0
        %498 = vmatpush1.msra.mxu0 0.0
        %499 = vmatprep.mubr.f32.mxu0 0.0
        %500 = vmatmul.mubr.f32.gmra.mrb[0].mxu0 %v421
        %v501 = vpop.f32.mrb[0].mxu0
        %v502 = vadd.f32 %v397, %v501
        %v503 = vpop.f32.mrb[0].mxu0
        %504 = vmatprep.mubr.f32.mxu0 0.0
        %505 = vmatmul.mubr.f32.gmra.mrb[0].mxu0 %v424
        %v506 = vpop.f32.mrb[0].mxu0
        %v507 = vadd.f32 %v402, %v506
        %v508 = vpop.f32.mrb[0].mxu0
        %509 = vmatprep.mubr.f32.mxu0 0.0
        %510 = vmatmul.mubr.f32.gmra.mrb[0].mxu0 %v427
        %v511 = vpop.f32.mrb[0].mxu0
        %v512 = vadd.f32 %v407, %v511
        %v513 = vpop.f32.mrb[0].mxu0
        %514 = vmatprep.mubr.f32.mxu0 0.0
        %515 = vmatmul.mubr.f32.gmra.mrb[0].mxu0 %v430
        %v516 = vpop.f32.mrb[0].mxu0
        %v517 = vadd.f32 %v412, %v516
        %v518 = vpop.f32.mrb[0].mxu0
        %519 = vmatprep.mubr.f32.mxu0 0.0
        %520 = vmatmul.mubr.f32.gmra.mrb[0].mxu0 %v433
        %v521 = vpop.f32.mrb[0].mxu0
        %v522 = vadd.f32 %v417, %v521
        %v523 = vpop.f32.mrb[0].mxu0
        %524 = vdwg.mxu0
        %v525 = vld [vmem:[#allocation6] sm:$0xff]
        %v526 = vld [vmem:[#allocation8] sm:$0xff]
        %528 = vset.pattern.permute.xlu0 0
        %529 = vperm.xlu0 %528, %v526
        %v530 = vpop.permute.xlu0 %529
        %v533 = vsel %vm419, %v525, 0
        %535 = vmatprep.subr.mxu0 0.0
        %536 = vmatpush1.msra.mxu0 %v380
        %537 = vmatprep.subr.mxu0 0.0
        %538 = vmatpush1.msra.mxu0 %v381
        %539 = vmatprep.subr.mxu0 0.0
        %540 = vmatpush1.msra.mxu0 %v382
        %541 = vmatprep.subr.mxu0 0.0
        %542 = vmatpush1.msra.mxu0 %v383
        %543 = vmatprep.subr.mxu0 0.0
        %544 = vmatpush1.msra.mxu0 0.0
        %545 = vmatprep.subr.mxu0 0.0
        %546 = vmatpush1.msra.mxu0 0.0
        %547 = vmatprep.subr.mxu0 0.0
        %548 = vmatpush1.msra.mxu0 0.0
        %549 = vmatprep.subr.mxu0 0.0
        %550 = vmatpush1.msra.mxu0 0.0
        %551 = vmatprep.subr.mxu0 0.0
        %552 = vmatpush1.msra.mxu0 0.0
        %553 = vmatprep.subr.mxu0 0.0
        %554 = vmatpush1.msra.mxu0 0.0
        %555 = vmatprep.subr.mxu0 0.0
        %556 = vmatpush1.msra.mxu0 0.0
        %557 = vmatprep.subr.mxu0 0.0
        %558 = vmatpush1.msra.mxu0 0.0
        %559 = vmatprep.subr.mxu0 0.0
        %560 = vmatpush1.msra.mxu0 0.0
        %561 = vmatprep.subr.mxu0 0.0
        %562 = vmatpush1.msra.mxu0 0.0
        %563 = vmatprep.subr.mxu0 0.0
        %564 = vmatpush1.msra.mxu0 0.0
        %565 = vmatprep.subr.mxu0 0.0
        %566 = vmatpush1.msra.mxu0 0.0
        %567 = vmatprep.subr.mxu0 0.0
        %568 = vmatpush1.msra.mxu0 0.0
        %569 = vmatprep.subr.mxu0 0.0
        %570 = vmatpush1.msra.mxu0 0.0
        %571 = vmatprep.subr.mxu0 0.0
        %572 = vmatpush1.msra.mxu0 0.0
        %573 = vmatprep.subr.mxu0 0.0
        %574 = vmatpush1.msra.mxu0 0.0
        %575 = vmatprep.subr.mxu0 0.0
        %576 = vmatpush1.msra.mxu0 0.0
        %577 = vmatprep.subr.mxu0 0.0
        %578 = vmatpush1.msra.mxu0 0.0
        %579 = vmatprep.subr.mxu0 0.0
        %580 = vmatpush1.msra.mxu0 0.0
        %581 = vmatprep.subr.mxu0 0.0
        %582 = vmatpush1.msra.mxu0 0.0
        %583 = vmatprep.subr.mxu0 0.0
        %584 = vmatpush1.msra.mxu0 0.0
        %585 = vmatprep.subr.mxu0 0.0
        %586 = vmatpush1.msra.mxu0 0.0
        %587 = vmatprep.subr.mxu0 0.0
        %588 = vmatpush1.msra.mxu0 0.0
        %589 = vmatprep.subr.mxu0 0.0
        %590 = vmatpush1.msra.mxu0 0.0
        %591 = vmatprep.subr.mxu0 0.0
        %592 = vmatpush1.msra.mxu0 0.0
        %593 = vmatprep.subr.mxu0 0.0
        %594 = vmatpush1.msra.mxu0 0.0
        %595 = vmatprep.subr.mxu0 0.0
        %596 = vmatpush1.msra.mxu0 0.0
        %597 = vmatprep.subr.mxu0 0.0
        %598 = vmatpush1.msra.mxu0 0.0
        %599 = vmatprep.mubr.f32.mxu0 0.0
        %600 = vmatmul.mubr.f32.gmra.mrb[0].mxu0 %v533
        %v601 = vpop.f32.mrb[0].mxu0
        %v602 = vadd.f32 %v530, %v601
        %v603 = vpop.f32.mrb[0].mxu0
        %604 = vdwg.mxu0
        %605 = vxpose.xlu0.b32.start [1/16] %v602, 128
        %606 = vxpose.xlu0.b32.cont [2/16] 0.0, 128
        %607 = vxpose.xlu0.b32.cont [3/16] 0.0, 128
        %608 = vxpose.xlu0.b32.cont [4/16] 0.0, 128
        %609 = vxpose.xlu0.b32.cont [5/16] 0.0, 128
        %610 = vxpose.xlu0.b32.cont [6/16] 0.0, 128
        %611 = vxpose.xlu0.b32.cont [7/16] 0.0, 128
        %612 = vxpose.xlu0.b32.cont [8/16] 0.0, 128
        %613 = vxpose.xlu0.b32.cont [9/16] 0.0, 128
        %614 = vxpose.xlu0.b32.cont [10/16] 0.0, 128
        %615 = vxpose.xlu0.b32.cont [11/16] 0.0, 128
        %616 = vxpose.xlu0.b32.cont [12/16] 0.0, 128
        %617 = vxpose.xlu0.b32.cont [13/16] 0.0, 128
        %618 = vxpose.xlu0.b32.cont [14/16] 0.0, 128
        %619 = vxpose.xlu0.b32.cont [15/16] 0.0, 128
        %620 = vxpose.xlu0.b32.end [16/16] 0.0, 128
        %v621 = vpop.trf.xlu0
        %v622 = vpop.trf.xlu0
        %v623 = vpop.trf.xlu0
        %v624 = vpop.trf.xlu0
        %v625 = vpop.trf.xlu0
        %v626 = vpop.trf.xlu0
        %v627 = vpop.trf.xlu0
        %v628 = vpop.trf.xlu0
        %v629 = vpop.trf.xlu0
        %v630 = vpop.trf.xlu0
        %v631 = vpop.trf.xlu0
        %v632 = vpop.trf.xlu0
        %v633 = vpop.trf.xlu0
        %v634 = vpop.trf.xlu0
        %v635 = vpop.trf.xlu0
        %v636 = vpop.trf.xlu0
        %vm637 = vcmask 64512
        %v639 = vsel %vm637, %v621, 0
        %v642 = vsel %vm637, %v622, 0
        %v645 = vsel %vm637, %v623, 0
        %v648 = vsel %vm637, %v624, 0
        %v651 = vsel %vm637, %v625, 0
        %v654 = vsel %vm637, %v626, 0
        %v657 = vsel %vm637, %v627, 0
        %v660 = vsel %vm637, %v628, 0
        %662 = vmatprep.subr.mxu0 0.0
        %663 = vmatpush1.msra.mxu0 %v502
        %664 = vmatprep.subr.mxu0 0.0
        %665 = vmatpush1.msra.mxu0 0.0
        %666 = vmatprep.subr.mxu0 0.0
        %667 = vmatpush1.msra.mxu0 0.0
        %668 = vmatprep.subr.mxu0 0.0
        %669 = vmatpush1.msra.mxu0 0.0
        %670 = vmatprep.subr.mxu0 0.0
        %671 = vmatpush1.msra.mxu0 0.0
        %672 = vmatprep.subr.mxu0 0.0
        %673 = vmatpush1.msra.mxu0 0.0
        %674 = vmatprep.subr.mxu0 0.0
        %675 = vmatpush1.msra.mxu0 0.0
        %676 = vmatprep.subr.mxu0 0.0
        %677 = vmatpush1.msra.mxu0 0.0
        %678 = vmatprep.subr.mxu0 0.0
        %679 = vmatpush1.msra.mxu0 0.0
        %680 = vmatprep.subr.mxu0 0.0
        %681 = vmatpush1.msra.mxu0 0.0
        %682 = vmatprep.subr.mxu0 0.0
        %683 = vmatpush1.msra.mxu0 0.0
        %684 = vmatprep.subr.mxu0 0.0
        %685 = vmatpush1.msra.mxu0 0.0
        %686 = vmatprep.subr.mxu0 0.0
        %687 = vmatpush1.msra.mxu0 0.0
        %688 = vmatprep.subr.mxu0 0.0
        %689 = vmatpush1.msra.mxu0 0.0
        %690 = vmatprep.subr.mxu0 0.0
        %691 = vmatpush1.msra.mxu0 0.0
        %692 = vmatprep.subr.mxu0 0.0
        %693 = vmatpush1.msra.mxu0 0.0
        %694 = vmatprep.subr.mxu0 0.0
        %695 = vmatpush1.msra.mxu0 0.0
        %696 = vmatprep.subr.mxu0 0.0
        %697 = vmatpush1.msra.mxu0 0.0
        %698 = vmatprep.subr.mxu0 0.0
        %699 = vmatpush1.msra.mxu0 0.0
        %700 = vmatprep.subr.mxu0 0.0
        %701 = vmatpush1.msra.mxu0 0.0
        %702 = vmatprep.subr.mxu0 0.0
        %703 = vmatpush1.msra.mxu0 0.0
        %704 = vmatprep.subr.mxu0 0.0
        %705 = vmatpush1.msra.mxu0 0.0
        %706 = vmatprep.subr.mxu0 0.0
        %707 = vmatpush1.msra.mxu0 0.0
        %708 = vmatprep.subr.mxu0 0.0
        %709 = vmatpush1.msra.mxu0 0.0
        %710 = vmatprep.subr.mxu0 0.0
        %711 = vmatpush1.msra.mxu0 0.0
        %712 = vmatprep.subr.mxu0 0.0
        %713 = vmatpush1.msra.mxu0 0.0
        %714 = vmatprep.subr.mxu0 0.0
        %715 = vmatpush1.msra.mxu0 0.0
        %716 = vmatprep.subr.mxu0 0.0
        %717 = vmatpush1.msra.mxu0 0.0
        %718 = vmatprep.subr.mxu0 0.0
        %719 = vmatpush1.msra.mxu0 0.0
        %720 = vmatprep.subr.mxu0 0.0
        %721 = vmatpush1.msra.mxu0 0.0
        %722 = vmatprep.subr.mxu0 0.0
        %723 = vmatpush1.msra.mxu0 0.0
        %724 = vmatprep.subr.mxu0 0.0
        %725 = vmatpush1.msra.mxu0 0.0
        %726 = vmatprep.mubr.f32.mxu0 0.0
        %727 = vmatmul.mubr.f32.gmra.mrb[0].mxu0 %v639
        %v728 = vpop.f32.mrb[0].mxu0
        %v729 = vadd.f32 0.0, %v728
        %v730 = vpop.f32.mrb[0].mxu0
        %731 = vmatprep.mubr.f32.mxu0 0.0
        %732 = vmatmul.mubr.f32.gmra.mrb[0].mxu0 %v642
        %v733 = vpop.f32.mrb[0].mxu0
        %v734 = vadd.f32 0.0, %v733
        %v735 = vpop.f32.mrb[0].mxu0
        %736 = vmatprep.mubr.f32.mxu0 0.0
        %737 = vmatmul.mubr.f32.gmra.mrb[0].mxu0 %v645
        %v738 = vpop.f32.mrb[0].mxu0
        %v739 = vadd.f32 0.0, %v738
        %v740 = vpop.f32.mrb[0].mxu0
        %741 = vmatprep.mubr.f32.mxu0 0.0
        %742 = vmatmul.mubr.f32.gmra.mrb[0].mxu0 %v648
        %v743 = vpop.f32.mrb[0].mxu0
        %v744 = vadd.f32 0.0, %v743
        %v745 = vpop.f32.mrb[0].mxu0
        %746 = vmatprep.mubr.f32.mxu0 0.0
        %747 = vmatmul.mubr.f32.gmra.mrb[0].mxu0 %v651
        %v748 = vpop.f32.mrb[0].mxu0
        %v749 = vadd.f32 0.0, %v748
        %v750 = vpop.f32.mrb[0].mxu0
        %751 = vmatprep.mubr.f32.mxu0 0.0
        %752 = vmatmul.mubr.f32.gmra.mrb[0].mxu0 %v654
        %v753 = vpop.f32.mrb[0].mxu0
        %v754 = vadd.f32 0.0, %v753
        %v755 = vpop.f32.mrb[0].mxu0
        %756 = vmatprep.mubr.f32.mxu0 0.0
        %757 = vmatmul.mubr.f32.gmra.mrb[0].mxu0 %v657
        %v758 = vpop.f32.mrb[0].mxu0
        %v759 = vadd.f32 0.0, %v758
        %v760 = vpop.f32.mrb[0].mxu0
        %761 = vmatprep.mubr.f32.mxu0 0.0
        %762 = vmatmul.mubr.f32.gmra.mrb[0].mxu0 %v660
        %v763 = vpop.f32.mrb[0].mxu0
        %v764 = vadd.f32 0.0, %v763
        %v765 = vpop.f32.mrb[0].mxu0
        %766 = vdwg.mxu0
        %vm767 = vcmask 523264
        %v768 = vsel %vm767, %v729, -inf
        %769 = vmax.xlane.f32.xlu0 %v768
        %v770 = vpop.xlane.xlu0 %769
        %v771 = vsel %vm767, %v734, -inf
        %772 = vmax.xlane.f32.xlu0 %v771
        %v773 = vpop.xlane.xlu0 %772
        %v774 = vsel %vm767, %v739, -inf
        %775 = vmax.xlane.f32.xlu0 %v774
        %v776 = vpop.xlane.xlu0 %775
        %v777 = vsel %vm767, %v744, -inf
        %778 = vmax.xlane.f32.xlu0 %v777
        %v779 = vpop.xlane.xlu0 %778
        %v780 = vsel %vm767, %v749, -inf
        %781 = vmax.xlane.f32.xlu0 %v780
        %v782 = vpop.xlane.xlu0 %781
        %v783 = vsel %vm767, %v754, -inf
        %784 = vmax.xlane.f32.xlu0 %v783
        %v785 = vpop.xlane.xlu0 %784
        %v786 = vsel %vm767, %v759, -inf
        %787 = vmax.xlane.f32.xlu0 %v786
        %v788 = vpop.xlane.xlu0 %787
        %v789 = vsel %vm767, %v764, -inf
        %790 = vmax.xlane.f32.xlu0 %v789
        %v791 = vpop.xlane.xlu0 %790
        %v792 = vsub.f32 %v729, %v770
        %v793 = vsub.f32 %v734, %v773
        %v794 = vsub.f32 %v739, %v776
        %v795 = vsub.f32 %v744, %v779
        %v796 = vsub.f32 %v749, %v782
        %v797 = vsub.f32 %v754, %v785
        %v798 = vsub.f32 %v759, %v788
        %v799 = vsub.f32 %v764, %v791
        %v800 = vmul.f32 %v792, 1.442695
        %v801 = vpow.pop %v800
        %v802 = vmul.f32 %v793, 1.442695
        %v803 = vpow.pop %v802
        %v804 = vmul.f32 %v794, 1.442695
        %v805 = vpow.pop %v804
        %v806 = vmul.f32 %v795, 1.442695
        %v807 = vpow.pop %v806
        %v808 = vmul.f32 %v796, 1.442695
        %v809 = vpow.pop %v808
        %v810 = vmul.f32 %v797, 1.442695
        %v811 = vpow.pop %v810
        %v812 = vmul.f32 %v798, 1.442695
        %v813 = vpow.pop %v812
        %v814 = vmul.f32 %v799, 1.442695
        %v815 = vpow.pop %v814
        %v816 = vsel %vm767, %v801, 0.0
        %817 = vadd.xlane.f32.xlu0 %v816
        %v818 = vpop.xlane.xlu0 %817
        %v819 = vsel %vm767, %v803, 0.0
        %820 = vadd.xlane.f32.xlu0 %v819
        %v821 = vpop.xlane.xlu0 %820
        %v822 = vsel %vm767, %v805, 0.0
        %823 = vadd.xlane.f32.xlu0 %v822
        %v824 = vpop.xlane.xlu0 %823
        %v825 = vsel %vm767, %v807, 0.0
        %826 = vadd.xlane.f32.xlu0 %v825
        %v827 = vpop.xlane.xlu0 %826
        %v828 = vsel %vm767, %v809, 0.0
        %829 = vadd.xlane.f32.xlu0 %v828
        %v830 = vpop.xlane.xlu0 %829
        %v831 = vsel %vm767, %v811, 0.0
        %832 = vadd.xlane.f32.xlu0 %v831
        %v833 = vpop.xlane.xlu0 %832
        %v834 = vsel %vm767, %v813, 0.0
        %835 = vadd.xlane.f32.xlu0 %v834
        %v836 = vpop.xlane.xlu0 %835
        %v837 = vsel %vm767, %v815, 0.0
        %838 = vadd.xlane.f32.xlu0 %v837
        %v839 = vpop.xlane.xlu0 %838
        %v840 = vrcp.pop %v818
        %v841 = vrcp.pop %v821
        %v842 = vrcp.pop %v824
        %v843 = vrcp.pop %v827
        %v844 = vrcp.pop %v830
        %v845 = vrcp.pop %v833
        %v846 = vrcp.pop %v836
        %v847 = vrcp.pop %v839
        %v848 = vmul.f32 %v801, %v840
        %v849 = vmul.f32 %v803, %v841
        %v850 = vmul.f32 %v805, %v842
        %v851 = vmul.f32 %v807, %v843
        %v852 = vmul.f32 %v809, %v844
        %v853 = vmul.f32 %v811, %v845
        %v854 = vmul.f32 %v813, %v846
        %v855 = vmul.f32 %v815, %v847
        %v857 = vsel %vm767, %v507, 0
        %v860 = vsel %vm767, %v512, 0
        %v863 = vsel %vm767, %v517, 0
        %v866 = vsel %vm767, %v522, 0
        %v869 = vsel %vm767, %v848, 0
        %v872 = vsel %vm767, %v849, 0
        %v875 = vsel %vm767, %v850, 0
        %v878 = vsel %vm767, %v851, 0
        %v881 = vsel %vm767, %v852, 0
        %v884 = vsel %vm767, %v853, 0
        %v887 = vsel %vm767, %v854, 0
        %v890 = vsel %vm767, %v855, 0
        %892 = vmatprep.subr.mxu0 0.0
        %893 = vmatpush1.xpose.msra.mxu0 %v869
        %894 = vmatprep.subr.mxu0 0.0
        %895 = vmatpush1.xpose.msra.mxu0 %v872
        %896 = vmatprep.subr.mxu0 0.0
        %897 = vmatpush1.xpose.msra.mxu0 %v875
        %898 = vmatprep.subr.mxu0 0.0
        %899 = vmatpush1.xpose.msra.mxu0 %v878
        %900 = vmatprep.subr.mxu0 0.0
        %901 = vmatpush1.xpose.msra.mxu0 %v881
        %902 = vmatprep.subr.mxu0 0.0
        %903 = vmatpush1.xpose.msra.mxu0 %v884
        %904 = vmatprep.subr.mxu0 0.0
        %905 = vmatpush1.xpose.msra.mxu0 %v887
        %906 = vmatprep.subr.mxu0 0.0
        %907 = vmatpush1.xpose.msra.mxu0 %v890
        %908 = vmatprep.subr.mxu0 0.0
        %909 = vmatpush1.xpose.msra.mxu0 0.0
        %910 = vmatprep.subr.mxu0 0.0
        %911 = vmatpush1.xpose.msra.mxu0 0.0
        %912 = vmatprep.subr.mxu0 0.0
        %913 = vmatpush1.xpose.msra.mxu0 0.0
        %914 = vmatprep.subr.mxu0 0.0
        %915 = vmatpush1.xpose.msra.mxu0 0.0
        %916 = vmatprep.subr.mxu0 0.0
        %917 = vmatpush1.xpose.msra.mxu0 0.0
        %918 = vmatprep.subr.mxu0 0.0
        %919 = vmatpush1.xpose.msra.mxu0 0.0
        %920 = vmatprep.subr.mxu0 0.0
        %921 = vmatpush1.xpose.msra.mxu0 0.0
        %922 = vmatprep.subr.mxu0 0.0
        %923 = vmatpush1.xpose.msra.mxu0 0.0
        %924 = vmatprep.subr.mxu0 0.0
        %925 = vmatpush1.xpose.msra.mxu0 0.0
        %926 = vmatprep.subr.mxu0 0.0
        %927 = vmatpush1.xpose.msra.mxu0 0.0
        %928 = vmatprep.subr.mxu0 0.0
        %929 = vmatpush1.xpose.msra.mxu0 0.0
        %930 = vmatprep.subr.mxu0 0.0
        %931 = vmatpush1.xpose.msra.mxu0 0.0
        %932 = vmatprep.subr.mxu0 0.0
        %933 = vmatpush1.xpose.msra.mxu0 0.0
        %934 = vmatprep.subr.mxu0 0.0
        %935 = vmatpush1.xpose.msra.mxu0 0.0
        %936 = vmatprep.subr.mxu0 0.0
        %937 = vmatpush1.xpose.msra.mxu0 0.0
        %938 = vmatprep.subr.mxu0 0.0
        %939 = vmatpush1.xpose.msra.mxu0 0.0
        %940 = vmatprep.subr.mxu0 0.0
        %941 = vmatpush1.xpose.msra.mxu0 0.0
        %942 = vmatprep.subr.mxu0 0.0
        %943 = vmatpush1.xpose.msra.mxu0 0.0
        %944 = vmatprep.subr.mxu0 0.0
        %945 = vmatpush1.xpose.msra.mxu0 0.0
        %946 = vmatprep.subr.mxu0 0.0
        %947 = vmatpush1.xpose.msra.mxu0 0.0
        %948 = vmatprep.subr.mxu0 0.0
        %949 = vmatpush1.xpose.msra.mxu0 0.0
        %950 = vmatprep.subr.mxu0 0.0
        %951 = vmatpush1.xpose.msra.mxu0 0.0
        %952 = vmatprep.subr.mxu0 0.0
        %953 = vmatpush1.xpose.msra.mxu0 0.0
        %954 = vmatprep.subr.mxu0 0.0
        %955 = vmatpush1.xpose.msra.mxu0 0.0
        %956 = vmatprep.mubr.f32.mxu0 0.0
        %957 = vmatmul.mubr.f32.gmra.mrb[0].mxu0 %v857
        %v958 = vpop.f32.mrb[0].mxu0
        %v959 = vadd.f32 0.0, %v958
        %v960 = vpop.f32.mrb[0].mxu0
        %961 = vmatprep.mubr.f32.mxu0 0.0
        %962 = vmatmul.mubr.f32.gmra.mrb[0].mxu0 %v860
        %v963 = vpop.f32.mrb[0].mxu0
        %v964 = vadd.f32 0.0, %v963
        %v965 = vpop.f32.mrb[0].mxu0
        %966 = vmatprep.mubr.f32.mxu0 0.0
        %967 = vmatmul.mubr.f32.gmra.mrb[0].mxu0 %v863
        %v968 = vpop.f32.mrb[0].mxu0
        %v969 = vadd.f32 0.0, %v968
        %v970 = vpop.f32.mrb[0].mxu0
        %971 = vmatprep.mubr.f32.mxu0 0.0
        %972 = vmatmul.mubr.f32.gmra.mrb[0].mxu0 %v866
        %v973 = vpop.f32.mrb[0].mxu0
        %v974 = vadd.f32 0.0, %v973
        %v975 = vpop.f32.mrb[0].mxu0
        %976 = vdwg.mxu0
        %s977 = sld [smem:[#allocation2]]
        %v978 = vstv %s977
        %v979 = vmul.f32 %v978, %v959
        %v980 = vmul.f32 %v978, %v964
        %v981 = vmul.f32 %v978, %v969
        %v982 = vmul.f32 %v978, %v974
        %v983 = vadd.f32 %v979, %v380
        %v984 = vadd.f32 %v980, %v381
        %v985 = vadd.f32 %v981, %v382
        %v986 = vadd.f32 %v982, %v383
        %987 = vst.msk [vmem:[%s371] sm:$0xff] %vm767, %v983
        %988 = vst.msk [vmem:[%s371 + $0x8] sm:$0xff] %vm767, %v984
        %989 = vst.msk [vmem:[%s371 + $0x10] sm:$0xff] %vm767, %v985
        %990 = vst.msk [vmem:[%s371 + $0x18] sm:$0xff] %vm767, %v986
        %991 = vst.msk [vmem:[%s378] sm:$0xff] %vm767, %v848
        %992 = vst.msk [vmem:[%s378 + $0x8] sm:$0xff] %vm767, %v849
        %993 = vst.msk [vmem:[%s378 + $0x10] sm:$0xff] %vm767, %v850
        %994 = vst.msk [vmem:[%s378 + $0x18] sm:$0xff] %vm767, %v851
        %995 = vst.msk [vmem:[%s378 + $0x20] sm:$0xff] %vm767, %v852
        %996 = vst.msk [vmem:[%s378 + $0x28] sm:$0xff] %vm767, %v853
        %997 = vst.msk [vmem:[%s378 + $0x30] sm:$0xff] %vm767, %v854
        %998 = vst.msk [vmem:[%s378 + $0x38] sm:$0xff] %vm767, %v855
        %s999 = sand.u32 %s184, 1
        %s1000 = scalar_lea.sflag [#allocation5], %s999
        %s1001 = sand.u32 %s184, 1
        %s1002 = smul.addr %s1001, 32
        %s1003 = scalar_lea.vmem [#allocation12], %s1002
        %s1004 = sand.u32 %s212, 1
        %s1005 = scalar_lea.sflag [#allocation14], %s1004
        %s1006 = sand.u32 %s212, 1
        %s1007 = smul.addr %s1006, 64
        %s1008 = scalar_lea.vmem [#allocation13], %s1007
        // Predicated region
        $region65: #{tpu_custom_call.1} parent=43 // pred_check
          %p1009 = pneg %p194
        $region66: #{tpu_custom_call.1} parent=43 // pred_check_branch
          %1011 = sbr.rel (%p1009) target = $region68
        $region67: #{tpu_custom_call.1} parent=43 // pred_region
          %s1013 = ssub.s32 512, 512
          %1014 = vsyncadd %s1000, %s1013
          %s1015 = smul.addr %s35, 4
          %s1016 = sadd.s32 %s36, %s1015
          %s1017 = smul.addr %s1016, 128
          %s1018 = scalar_lea.hbm %s6, %s1017
          %s1019 = sshll.u32 %s1003, 4
          %s1020 = int_to_ptr.vmem [resolvable:$true] %s1019
          %1025 = dma.vmem_to_hbm [thread:$0]  %s1020, 512, %s1018, %s1000, 128, 128, 8
        $region68: #{tpu_custom_call.1} parent=43 // pred_fallthru
          _
        // Predicated region
        $region69: #{tpu_custom_call.1} parent=43 // pred_check
          %p1026 = pneg %p222
        $region70: #{tpu_custom_call.1} parent=43 // pred_check_branch
          %1028 = sbr.rel (%p1026) target = $region72
        $region71: #{tpu_custom_call.1} parent=43 // pred_region
          %s1029 = smul.u32 8, %s36
          %s1031 = ssub.s32 1024, 1024
          %1032 = vsyncadd %s1005, %s1031
          %s1033 = smul.addr %s35, 8
          %s1034 = sadd.s32 %s1029, %s1033
          %s1035 = smul.addr %s1034, 128
          %s1036 = scalar_lea.hbm %s7, %s1035
          %s1037 = sshll.u32 %s1008, 4
          %s1038 = int_to_ptr.vmem [resolvable:$true] %s1037
          %1043 = dma.vmem_to_hbm [thread:$0]  %s1038, 1024, %s1036, %s1005, 128, 128, 8
        $region72: #{tpu_custom_call.1} parent=43 // pred_fallthru
          _
      $region44: #{tpu_custom_call.1} parent=5 // pred_fallthru
        _
      %p1044 = scmp.le.s32.totalorder 2, %s26
      // Predicated region
      $region73: #{tpu_custom_call.1} parent=5 // pred_check
        %p1045 = pneg %p1044
      $region74: #{tpu_custom_call.1} parent=5 // pred_check_branch
        %1047 = sbr.rel (%p1045) target = $region76
      $region75: #{tpu_custom_call.1} parent=5 // pred_region
        %s1048 = ssub.s32 %s26, 2
        // Predicated region
        $region77: #{tpu_custom_call.1} parent=75 // pred_check
          %p1049 = pneg %p200
        $region78: #{tpu_custom_call.1} parent=75 // pred_check_branch
          %1051 = sbr.rel (%p1049) target = $region80
        $region79: #{tpu_custom_call.1} parent=75 // pred_region
          %s1052 = sand.u32 %s185, 1
          %s1053 = scalar_lea.sflag [#allocation5], %s1052
          %s1054 = sand.u32 %s185, 1
          %s1055 = smul.addr %s1054, 32
          %s1056 = scalar_lea.vmem [#allocation12], %s1055
          %1057 = dma.done %s1053, 512
        $region80: #{tpu_custom_call.1} parent=75 // pred_fallthru
          _
        // Predicated region
        $region81: #{tpu_custom_call.1} parent=75 // pred_check
          %p1058 = pneg %p228
        $region82: #{tpu_custom_call.1} parent=75 // pred_check_branch
          %1060 = sbr.rel (%p1058) target = $region84
        $region83: #{tpu_custom_call.1} parent=75 // pred_region
          %s1061 = sand.u32 %s213, 1
          %s1062 = scalar_lea.sflag [#allocation14], %s1061
          %s1063 = sand.u32 %s213, 1
          %s1064 = smul.addr %s1063, 64
          %s1065 = scalar_lea.vmem [#allocation13], %s1064
          %1066 = dma.done %s1062, 1024
        $region84: #{tpu_custom_call.1} parent=75 // pred_fallthru
          _
      $region76: #{tpu_custom_call.1} parent=5 // pred_fallthru
        _
    $region6: #{tpu_custom_call.1} parent=1 // loop_footer
      %s30 = sadd.s32 1, %s26
    $region7: #{tpu_custom_call.1} parent=1 // loop_footer_branch
      %25 = sbr.rel target = $region3
    $region8: #{tpu_custom_call.1} parent=1 // loop_exit
      _
    %1067 = vsyncpa [#allocation4], 1
    %s1068 = scalar_lea.sflag [#allocation4], 1
    %1069 = vsyncpa %s1068, 1
    %1070 = vsyncpa [#allocation7], 1
    %1071 = vsyncpa [#allocation10], 1
    %1072 = vsyncpa [#allocation5], 1
    %s1073 = scalar_lea.sflag [#allocation5], 1
    %1074 = vsyncpa %s1073, 1
    %1075 = vsyncpa [#allocation14], 1
    %s1076 = scalar_lea.sflag [#allocation14], 1
    %1077 = vsyncpa %s1076, 1

</llo_original>
